<compile_context>
chip_gen: v7x
topology: tpu7x:2x2x1
jax: 0.10.0
libtpu: 0.0.40
codegen_flags: <defaults>
</compile_context>

<pallas_src>
import functools

import jax
import jax.numpy as jnp
from jax.experimental import pallas as pl
from jax.experimental.pallas import tpu as pltpu

_MiB = 1024 * 1024


def _round_up(x, m):
    return ((x + m - 1) // m) * m


def _encoding_kernel(x_ref, w_ref, b_ref, o_ref, *, tb, x_resident, vpu_max_k):
    # x_ref: (tb, K) streamed  OR  (B_pad, K) VMEM-resident (x_resident=True)
    # w_ref: (K, N)  VMEM-resident across batch tiles
    # b_ref: (1, N)  VMEM-resident across batch tiles
    # o_ref: (tb, N)
    if x_resident:
        # Single resident x block shared by all grid steps; slice the current
        # batch tile out of it (no per-step x DMA, frees the vector-misc slot).
        i = pl.program_id(0)
        x = x_ref[pl.ds(pl.multiple_of(i * tb, 8), tb), :]
    else:
        x = x_ref[...]
    x = x.astype(jnp.float32)
    w = w_ref[...].astype(jnp.float32)
    K = x.shape[1]

    if K <= vpu_max_k:
        # VPU broadcast-FMA: exact in f32; good when the MXU LHS vreg would be
        # >90% lane padding and the output DMA hides the VALU work (v5e/v6e).
        acc = x[:, 0:1] * w[0:1, :]
        for k in range(1, K):
            acc = acc + x[:, k:k + 1] * w[k:k + 1, :]
    else:
        # MXU path (also used when vpu_max_k=0 is passed, e.g. on v7x).
        # HIGHEST keeps f32 fidelity; for large K, casting x/w to bf16 while
        # keeping f32 accumulation uses the native MXU path on v6e/v7x.
        acc = jnp.dot(x, w, preferred_element_type=jnp.float32,
                      precision=jax.lax.Precision.HIGHEST)

    acc = acc + b_ref[...].astype(jnp.float32)   # bias broadcast over batch
    o_ref[...] = jnp.maximum(acc, 0.0).astype(o_ref.dtype)


@functools.partial(jax.jit, static_argnames=("tile_b", "vpu_max_k"))
def encoding_layer(x, w_t, b, *, tile_b=4096, vpu_max_k=8):
    """relu(x @ w_t + b) via a Pallas TPU kernel.

    x:   (B, input_size) float32
    w_t: (input_size, encoding_size) float32   (transposed nn.Linear weight)
    b:   (encoding_size,) or (1, encoding_size) float32
    returns (B, encoding_size) float32
    """
    B, K = x.shape
    K2, N = w_t.shape
    assert K == K2
    b2 = b.reshape(1, N) if b.ndim == 1 else b

    # ---- tile selection -----------------------------------------------------
    if B <= 512:
        # Tiny / module-default batch: one grid step, one wide lane-dense store.
        # TODO(synk): at B=8 this call is pure launch overhead; fuse it into the
        # adjacent producer/consumer kernel instead of running it standalone.
        tb = B
        grid_len = 1
    else:
        # Balanced tiles, at least 2 grid steps (v7x megacore sharding of the
        # "parallel" batch axis), no tiny ragged remainder tile.
        g = max(2, pl.cdiv(B, tile_b))
        tb = _round_up(pl.cdiv(B, g), 8)
        grid_len = pl.cdiv(B, tb)

    # ---- x residency --------------------------------------------------------
    b_pad = grid_len * tb
    x_resident = grid_len > 1 and b_pad * 128 * 4 <= 2 * _MiB
    if x_resident:
        x_in = jnp.pad(x, ((0, b_pad - B), (0, 0))) if b_pad != B else x
        x_spec = pl.BlockSpec((b_pad, K), lambda i: (0, 0))       # resident
    else:
        x_in = x
        x_spec = pl.BlockSpec((tb, K), lambda i: (i, 0))          # streamed

    # ---- VMEM budget derived from the chosen tiles --------------------------
    lane = lambda n: _round_up(n, 128)
    sub = lambda n: _round_up(n, 8)
    x_rows = b_pad if x_resident else tb
    vmem_needed = (2 * tb * lane(N) * 4            # output (double-buffered)
                   + 2 * sub(x_rows) * lane(K) * 4  # x (lane-padded)
                   + 2 * sub(K) * lane(N) * 4       # weight (resident)
                   + 2 * 8 * lane(N) * 4)           # bias   (resident)
    vmem_limit = max(16 * _MiB, vmem_needed + 4 * _MiB)
    if vmem_limit > 64 * _MiB:                      # only legal on v5e/v6e
        vmem_limit = min(vmem_limit, 128 * _MiB)

    cost = pl.CostEstimate(
        flops=2 * B * K * N + 2 * B * N,
        transcendentals=0,
        bytes_accessed=B * N * 4 + B * K * 4 + K * N * 4 + N * 4,
    )

    kernel = functools.partial(_encoding_kernel, tb=tb,
                               x_resident=x_resident, vpu_max_k=vpu_max_k)

    return pl.pallas_call(
        kernel,
        out_shape=jax.ShapeDtypeStruct((B, N), x.dtype),
        grid_spec=pltpu.PrefetchScalarGridSpec(
            num_scalar_prefetch=0,
            grid=(grid_len,),
            in_specs=[
                x_spec,
                pl.BlockSpec((K, N), lambda i: (0, 0)),    # weight: VMEM-resident
                pl.BlockSpec((1, N), lambda i: (0, 0)),    # bias:   VMEM-resident
            ],
            out_specs=pl.BlockSpec((tb, N), lambda i: (i, 0)),
        ),
        compiler_params=pltpu.CompilerParams(
            dimension_semantics=("parallel",),             # batch axis over TCs
            vmem_limit_bytes=int(vmem_limit),
        ),
        cost_estimate=cost,
    )(x_in, w_t, b2)


def init_params(key, input_size, encoding_size):
    # Deterministic init mimicking nn.Linear's uniform(-1/sqrt(fan_in), 1/sqrt(fan_in))
    kw, kb = jax.random.split(key)
    bound = 1.0 / jnp.sqrt(jnp.float32(input_size))
    # PyTorch weight is (encoding_size, input_size); store transposed for the kernel.
    w = jax.random.uniform(kw, (encoding_size, input_size), jnp.float32, -bound, bound)
    b = jax.random.uniform(kb, (encoding_size,), jnp.float32, -bound, bound)
    return w.T, b  # (input_size, encoding_size), (encoding_size,)


if __name__ == "__main__":
    input_size = 2
    encoding_size = 512
    batch = 8

    key = jax.random.PRNGKey(0)
    kx, kp = jax.random.split(key)
    x = jax.random.normal(kx, (batch, input_size), jnp.float32)
    w_t, b = init_params(kp, input_size, encoding_size)

    # Module-default shape: single grid step, VPU path.
    out = jax.block_until_ready(encoding_layer(x, w_t, b))
    ref = jnp.maximum(x @ w_t + b[None, :], 0.0)
    assert out.shape == (batch, encoding_size)
    assert jnp.allclose(out, ref, atol=1e-5, rtol=1e-5), "mismatch vs reference (VPU)"

    # Force the MXU path (vpu_max_k=0), as recommended for v7x.
    out_mxu = jax.block_until_ready(encoding_layer(x, w_t, b, vpu_max_k=0))
    assert jnp.allclose(out_mxu, ref, atol=1e-4, rtol=1e-4), "mismatch vs reference (MXU)"

    # Ragged batch: balanced tiles (3 steps of 688 rows) + VMEM-resident x.
    big_B = 2056
    xb = jax.random.normal(kx, (big_B, input_size), jnp.float32)
    outb = jax.block_until_ready(encoding_layer(xb, w_t, b, tile_b=1024))
    refb = jnp.maximum(xb @ w_t + b[None, :], 0.0)
    assert jnp.allclose(outb, refb, atol=1e-5, rtol=1e-5), "mismatch vs reference (resident)"

    # Larger batch: streamed x, 2 balanced 4096-row tiles (megacore on v7x).
    huge_B = 8192
    xh = jax.random.normal(kx, (huge_B, input_size), jnp.float32)
    outh = jax.block_until_ready(encoding_layer(xh, w_t, b))
    refh = jnp.maximum(xh @ w_t + b[None, :], 0.0)
    assert jnp.allclose(outh, refh, atol=1e-5, rtol=1e-5), "mismatch vs reference (streamed)"

    print("KERNEL_OK")
</pallas_src>

<mosaic_0001>
module attributes {stable_mosaic.version = 11 : i64} {
  func.func @_encoding_kernel(%arg0: i32, %arg1: memref<8x2xf32, #tpu.memory_space<vmem>>, %arg2: memref<2x512xf32, #tpu.memory_space<vmem>>, %arg3: memref<1x512xf32, #tpu.memory_space<vmem>>, %arg4: memref<8x512xf32, #tpu.memory_space<vmem>>) attributes {dimension_semantics = [#tpu.dimension_semantics<parallel>], iteration_bounds = array<i64: 1>, scalar_prefetch = 0 : i64, scratch_operands = 0 : i64, tpu.core_type = #tpu.core_type<tc>, window_params = [{transform_indices = @transform_0, window_bounds = array<i64: 8, 2>}, {pipeline_mode = #tpu.pipeline_mode<synchronous>, transform_indices = @transform_1, window_bounds = array<i64: 2, 512>}, {pipeline_mode = #tpu.pipeline_mode<synchronous>, transform_indices = @transform_2, window_bounds = array<i64: 1, 512>}, {transform_indices = @transform_3, window_bounds = array<i64: 8, 512>}]} {
    %c0 = arith.constant 0 : index
    %c0_0 = arith.constant 0 : index
    %0 = vector.load %arg1[%c0, %c0_0] : memref<8x2xf32, #tpu.memory_space<vmem>>, vector<8x2xf32>
    %c0_1 = arith.constant 0 : index
    %c0_2 = arith.constant 0 : index
    %1 = vector.load %arg2[%c0_1, %c0_2] : memref<2x512xf32, #tpu.memory_space<vmem>>, vector<2x512xf32>
    %2 = vector.extract_strided_slice %0 {offsets = [0, 0], sizes = [8, 1], strides = [1, 1]} : vector<8x2xf32> to vector<8x1xf32>
    %3 = vector.extract_strided_slice %1 {offsets = [0, 0], sizes = [1, 512], strides = [1, 1]} : vector<2x512xf32> to vector<1x512xf32>
    %4 = vector.broadcast %2 : vector<8x1xf32> to vector<8x512xf32>
    %5 = vector.broadcast %3 : vector<1x512xf32> to vector<8x512xf32>
    %6 = arith.mulf %4, %5 : vector<8x512xf32>
    %7 = vector.extract_strided_slice %0 {offsets = [0, 1], sizes = [8, 1], strides = [1, 1]} : vector<8x2xf32> to vector<8x1xf32>
    %8 = vector.extract_strided_slice %1 {offsets = [1, 0], sizes = [1, 512], strides = [1, 1]} : vector<2x512xf32> to vector<1x512xf32>
    %9 = vector.broadcast %7 : vector<8x1xf32> to vector<8x512xf32>
    %10 = vector.broadcast %8 : vector<1x512xf32> to vector<8x512xf32>
    %11 = arith.mulf %9, %10 : vector<8x512xf32>
    %12 = arith.addf %6, %11 : vector<8x512xf32>
    %c0_3 = arith.constant 0 : index
    %c0_4 = arith.constant 0 : index
    %13 = vector.load %arg3[%c0_3, %c0_4] : memref<1x512xf32, #tpu.memory_space<vmem>>, vector<1x512xf32>
    %14 = vector.broadcast %13 : vector<1x512xf32> to vector<8x512xf32>
    %15 = arith.addf %12, %14 : vector<8x512xf32>
    %cst = arith.constant 0.000000e+00 : f32
    %16 = vector.broadcast %cst : f32 to vector<8x512xf32>
    %17 = arith.maximumf %15, %16 : vector<8x512xf32>
    %c0_5 = arith.constant 0 : index
    %c0_6 = arith.constant 0 : index
    %18 = vector.load %arg4[%c0_5, %c0_6] : memref<8x512xf32, #tpu.memory_space<vmem>>, vector<8x512xf32>
    tpu.vector_store %arg4[%c0_5, %c0_6], %17 {strides = array<i32>} : memref<8x512xf32, #tpu.memory_space<vmem>>, vector<8x512xf32>,
    return
  }
  func.func @transform_0(%arg0: i32) -> (i32, i32) {
    %c0_i32 = arith.constant 0 : i32
    %c0_i32_0 = arith.constant 0 : i32
    return %arg0, %c0_i32 : i32, i32
  }
  func.func @transform_1(%arg0: i32) -> (i32, i32) {
    %c0_i32 = arith.constant 0 : i32
    %c0_i32_0 = arith.constant 0 : i32
    %c0_i32_1 = arith.constant 0 : i32
    return %c0_i32, %c0_i32_0 : i32, i32
  }
  func.func @transform_2(%arg0: i32) -> (i32, i32) {
    %c0_i32 = arith.constant 0 : i32
    %c0_i32_0 = arith.constant 0 : i32
    %c0_i32_1 = arith.constant 0 : i32
    return %c0_i32, %c0_i32_0 : i32, i32
  }
  func.func @transform_3(%arg0: i32) -> (i32, i32) {
    %c0_i32 = arith.constant 0 : i32
    %c0_i32_0 = arith.constant 0 : i32
    return %arg0, %c0_i32 : i32, i32
  }
}

</mosaic_0001>

<llo_original>
// kernel: encoding_layer.1
$region0: #{encoding_layer.1}
  #allocation0 [shape = 'u32[]', space=smem, size = 0x4, offset = 0x4, fixed_abs, tag = 'smem constant byte address 0x4 - core index']
  #allocation1 [shape = 'u32[144,128]{1,0:T(1,128)}', space=vmem, size = 0x12000, scoped, tag = 'internal scratch']
  %s0 = inlined_call_operand.vmem [shape: f32[8,2], index: 0, kind: input, shape index: {}]
  %s1 = inlined_call_operand.vmem [shape: f32[2,512], index: 1, kind: input, shape index: {}]
  %s2 = inlined_call_operand.vmem [shape: f32[1,512], index: 2, kind: input, shape index: {}]
  %s3 = inlined_call_operand.hbm [shape: f32[8,512], index: 3, kind: output, shape index: {}]
  %s4 = sld [smem:[#allocation0]]
  $region22: #{encoding_layer.1} parent=0
    _
  %s6 = ssub.s32 1, %s4
  %s7 = scalar_select 0, %s6, %s4
  $region1: #{encoding_layer.1} parent=0
    #allocation2 [shape = 'u8[16384]{0}', space=vmem, size = 0x4000, scoped, tag = 'output window, operand 0, single buffered']
    #allocation3 [shape = 's32[1]{0}', space=sflag, size = 0x4, scoped, tag = 'scoped memory for encoding_layer.1']
    %8 = vsyncpa [#allocation3], 0
    // Predicated region
    $region2: #{encoding_layer.1} parent=1 // pred_check
      _
    $region3: #{encoding_layer.1} parent=1 // pred_check_branch
      %10 = sbr.rel (0) target = $region5
    $region4: #{encoding_layer.1} parent=1 // pred_region
      _
    $region5: #{encoding_layer.1} parent=1 // pred_fallthru
      _
    // Predicated region
    $region6: #{encoding_layer.1} parent=1 // pred_check
      _
    $region7: #{encoding_layer.1} parent=1 // pred_check_branch
      %12 = sbr.rel (0) target = $region9
    $region8: #{encoding_layer.1} parent=1 // pred_region
      _
    $region9: #{encoding_layer.1} parent=1 // pred_fallthru
      _
    // Predicated region
    $region10: #{encoding_layer.1} parent=1 // pred_check
      _
    $region11: #{encoding_layer.1} parent=1 // pred_check_branch
      %14 = sbr.rel (0) target = $region13
    $region12: #{encoding_layer.1} parent=1 // pred_region
      _
    $region13: #{encoding_layer.1} parent=1 // pred_fallthru
      _
    %v15 = vld [vmem:[%s0] sm:$0xff]
    %v16 = vld [vmem:[%s1] sm:$0xff]
    %18 = vset.pattern.permute.xlu0 0
    %19 = vperm.xlu0 %18, %v15
    %v20 = vpop.permute.xlu0 %19
    %v23 = vlaneseq
    %v24 = vshrl.u32 %v23, 7
    %v25 = vsub.s32 0, %v24
    %v26 = vrot.slane %v16, %v25
    %v27 = vlaneseq
    %v28 = vshrl.u32 %v27, 7
    %v29 = vsub.s32 2, %v28
    %v30 = vrot.slane %v16, %v29
    %v31 = vlaneseq
    %v32 = vshrl.u32 %v31, 7
    %v33 = vsub.s32 4, %v32
    %v34 = vrot.slane %v16, %v33
    %v35 = vlaneseq
    %v36 = vshrl.u32 %v35, 7
    %v37 = vsub.s32 6, %v36
    %v38 = vrot.slane %v16, %v37
    %v43 = vlaneseq
    %v44 = vshrl.u32 %v43, 7
    %v45 = vsub.s32 0, %v44
    %v46 = vrot.slane %v26, %v45
    %v47 = vlaneseq
    %v48 = vshrl.u32 %v47, 7
    %v49 = vsub.s32 0, %v48
    %v50 = vrot.slane %v30, %v49
    %v51 = vlaneseq
    %v52 = vshrl.u32 %v51, 7
    %v53 = vsub.s32 0, %v52
    %v54 = vrot.slane %v34, %v53
    %v55 = vlaneseq
    %v56 = vshrl.u32 %v55, 7
    %v57 = vsub.s32 0, %v56
    %v58 = vrot.slane %v38, %v57
    %v59 = vmul.f32 %v20, %v46
    %v60 = vmul.f32 %v20, %v50
    %v61 = vmul.f32 %v20, %v54
    %v62 = vmul.f32 %v20, %v58
    %63 = vset.pattern.permute.xlu0 1
    %64 = vperm.xlu0 %63, %v15
    %v65 = vpop.permute.xlu0 %64
    %v67 = vlaneseq
    %v68 = vshrl.u32 %v67, 7
    %v69 = vsub.s32 1, %v68
    %v70 = vrot.slane %v16, %v69
    %v71 = vlaneseq
    %v72 = vshrl.u32 %v71, 7
    %v73 = vsub.s32 3, %v72
    %v74 = vrot.slane %v16, %v73
    %v75 = vlaneseq
    %v76 = vshrl.u32 %v75, 7
    %v77 = vsub.s32 5, %v76
    %v78 = vrot.slane %v16, %v77
    %v79 = vlaneseq
    %v80 = vshrl.u32 %v79, 7
    %v81 = vsub.s32 7, %v80
    %v82 = vrot.slane %v16, %v81
    %v87 = vlaneseq
    %v88 = vshrl.u32 %v87, 7
    %v89 = vsub.s32 1, %v88
    %v90 = vrot.slane %v70, %v89
    %v91 = vlaneseq
    %v92 = vshrl.u32 %v91, 7
    %v93 = vsub.s32 1, %v92
    %v94 = vrot.slane %v74, %v93
    %v95 = vlaneseq
    %v96 = vshrl.u32 %v95, 7
    %v97 = vsub.s32 1, %v96
    %v98 = vrot.slane %v78, %v97
    %v99 = vlaneseq
    %v100 = vshrl.u32 %v99, 7
    %v101 = vsub.s32 1, %v100
    %v102 = vrot.slane %v82, %v101
    %v103 = vmul.f32 %v65, %v90
    %v104 = vmul.f32 %v65, %v94
    %v105 = vmul.f32 %v65, %v98
    %v106 = vmul.f32 %v65, %v102
    %v107 = vadd.f32 %v59, %v103
    %v108 = vadd.f32 %v60, %v104
    %v109 = vadd.f32 %v61, %v105
    %v110 = vadd.f32 %v62, %v106
    %v111 = vld [vmem:[%s2] sm:$0xf]
    %v113 = vlaneseq
    %v114 = vshrl.u32 %v113, 7
    %v115 = vsub.s32 0, %v114
    %v116 = vrot.slane %v111, %v115
    %v117 = vlaneseq
    %v118 = vshrl.u32 %v117, 7
    %v119 = vsub.s32 1, %v118
    %v120 = vrot.slane %v111, %v119
    %v121 = vlaneseq
    %v122 = vshrl.u32 %v121, 7
    %v123 = vsub.s32 2, %v122
    %v124 = vrot.slane %v111, %v123
    %v125 = vlaneseq
    %v126 = vshrl.u32 %v125, 7
    %v127 = vsub.s32 3, %v126
    %v128 = vrot.slane %v111, %v127
    %v133 = vadd.f32 %v107, %v116
    %v134 = vadd.f32 %v108, %v120
    %v135 = vadd.f32 %v109, %v124
    %v136 = vadd.f32 %v110, %v128
    %v137 = vmax.f32 %v133, 0.0
    %v138 = vmax.f32 %v134, 0.0
    %v139 = vmax.f32 %v135, 0.0
    %v140 = vmax.f32 %v136, 0.0
    %141 = vst [vmem:[#allocation2] sm:$0xff] %v137
    %142 = vst [vmem:[#allocation2 + $0x8] sm:$0xff] %v138
    %143 = vst [vmem:[#allocation2 + $0x10] sm:$0xff] %v139
    %144 = vst [vmem:[#allocation2 + $0x18] sm:$0xff] %v140
    // Predicated region
    $region14: #{encoding_layer.1} parent=1 // pred_check
      _
    $region15: #{encoding_layer.1} parent=1 // pred_check_branch
      %146 = sbr.rel (0) target = $region17
    $region16: #{encoding_layer.1} parent=1 // pred_region
      %s148 = ssub.s32 512, 512
      %149 = vsyncadd [#allocation3], %s148
      %s151 = sshll.u32 [#allocation2], 4
      %s152 = int_to_ptr.vmem [resolvable:$true] %s151
      %154 = dma.vmem_to_hbm [thread:$0]  %s152, 512, %s3, [#allocation3]
    $region17: #{encoding_layer.1} parent=1 // pred_fallthru
      _
    // Predicated region
    $region18: #{encoding_layer.1} parent=1 // pred_check
      _
    $region19: #{encoding_layer.1} parent=1 // pred_check_branch
      %156 = sbr.rel (0) target = $region21
    $region20: #{encoding_layer.1} parent=1 // pred_region
      %157 = dma.done [#allocation3], 512
    $region21: #{encoding_layer.1} parent=1 // pred_fallthru
      _
    %158 = vsyncpa [#allocation3], 1

</llo_original>
